<compile_context>
chip_gen: v6e
topology: v6e:2x2x1
jax: 0.10.0
libtpu: 0.0.40
codegen_flags: <defaults>
</compile_context>

<pallas_src>
import functools

import jax
import jax.numpy as jnp
from jax.experimental import pallas as pl
from jax.experimental.pallas import tpu as pltpu


# ---------------------------------------------------------------------------
# Kernel A (small R): whole (R, bt, D) review block VMEM-resident, reduced
# with R unrolled VPU adds (reduction axis leads -> no XLU cross-sublane work).
# ---------------------------------------------------------------------------
def _item_rep_kernel_r_resident(review_ref, title_ref, out_ref, *, inv_r):
    # review_ref: (R, bt, D), title_ref: (bt, D) f32, out_ref: (bt, D)
    R = review_ref.shape[0]
    acc = review_ref[0].astype(jnp.float32)
    for r in range(1, R):                      # static small R -> unrolled
        acc = acc + review_ref[r].astype(jnp.float32)
    out_ref[...] = (acc * inv_r + title_ref[...].astype(jnp.float32)).astype(out_ref.dtype)


# ---------------------------------------------------------------------------
# Kernel B (large R): R is a trailing "arbitrary" grid axis; a (bt, D) f32
# VMEM scratch accumulates across it.  Per-step VMEM is independent of R.
# ---------------------------------------------------------------------------
def _item_rep_kernel_r_grid(review_ref, title_ref, out_ref, acc_ref, *, inv_r):
    r = pl.program_id(1)

    @pl.when(r == 0)
    def _():
        acc_ref[...] = jnp.zeros_like(acc_ref)

    acc_ref[...] += review_ref[...].astype(jnp.float32)

    @pl.when(r == pl.num_programs(1) - 1)
    def _():
        out_ref[...] = (acc_ref[...] * inv_r
                        + title_ref[...].astype(jnp.float32)).astype(out_ref.dtype)


# ---------------------------------------------------------------------------
# Tile sizing
# ---------------------------------------------------------------------------
def _per_row_vmem_bytes(r_block, D, rev_isz, title_isz, out_isz):
    # Double-buffered review/title/out blocks + in-kernel f32 working set
    # (accumulator + one upcast slice) — that lives in VMEM, not vregs, at
    # realistic bt.
    return D * (2 * r_block * rev_isz + 2 * title_isz + 2 * out_isz) + 2 * D * 4


def _pick_bt(B_pad, R, D, rev_isz, title_isz, out_isz, *, r_resident,
             target_step_review_bytes=2 << 20, vmem_budget_bytes=12 << 20):
    """Batch tile: sublane-aligned divisor of B_pad, capped at the HBM-roofline
    saturation point and a conservative (v5e-safe) VMEM budget, preferring an
    even step count >= 4 so v7x's two TensorCores each pipeline >=2 steps."""
    r_block = R if r_resident else 1
    per_row = _per_row_vmem_bytes(r_block, D, rev_isz, title_isz, out_isz)
    step_row_bytes = r_block * D * rev_isz            # review bytes / step / row
    cap = min(max(8, vmem_budget_bytes // per_row),
              max(8, target_step_review_bytes // step_row_bytes))
    cands = [bt for bt in range(8, B_pad + 1, 8) if B_pad % bt == 0]
    fitting = [bt for bt in cands if bt <= cap] or [min(cands)]
    pref = ([bt for bt in fitting if (B_pad // bt) >= 4 and (B_pad // bt) % 2 == 0]
            or [bt for bt in fitting if (B_pad // bt) % 2 == 0]
            or fitting)
    return max(pref)


# ---------------------------------------------------------------------------
# Pallas wrapper: mean over n_review + add title embedding
# ---------------------------------------------------------------------------
def item_rep_pallas(review_emb_rbd, title_emb, *, bt=None,
                    out_dtype=jnp.bfloat16, r_grid_threshold=16,
                    force_r_grid=False):
    """review_emb_rbd: (R, B, D); title_emb: (B, D) -> (B, D) out_dtype."""
    R, B, D = review_emb_rbd.shape
    assert title_emb.shape == (B, D)

    # Pad batch to a sublane multiple so an aligned tile always exists.
    B_pad = ((B + 7) // 8) * 8
    if B_pad != B:
        review_emb_rbd = jnp.pad(review_emb_rbd, ((0, 0), (0, B_pad - B), (0, 0)))
        title_emb = jnp.pad(title_emb, ((0, B_pad - B), (0, 0)))

    use_r_grid = force_r_grid or (R >= r_grid_threshold)
    rev_isz = jnp.dtype(review_emb_rbd.dtype).itemsize
    title_isz = jnp.dtype(title_emb.dtype).itemsize
    out_isz = jnp.dtype(out_dtype).itemsize

    if bt is None:
        bt = _pick_bt(B_pad, R, D, rev_isz, title_isz, out_isz,
                      r_resident=not use_r_grid)
    assert B_pad % bt == 0 and bt % 8 == 0

    r_block = R if not use_r_grid else 1
    footprint = bt * _per_row_vmem_bytes(r_block, D, rev_isz, title_isz, out_isz)
    # Explicit scoped-VMEM limit matching the budget + headroom (v5e default is
    # only 16 MiB; 32 MiB stays within every generation's physical VMEM).
    vmem_limit = int(min(32 << 20, max(16 << 20, 2 * footprint)))

    inv_r = float(1.0 / R)
    if use_r_grid:
        kernel = functools.partial(_item_rep_kernel_r_grid, inv_r=inv_r)
        grid = (B_pad // bt, R)
        in_specs = [pl.BlockSpec((None, bt, D), lambda i, r: (r, i, 0)),
                    pl.BlockSpec((bt, D), lambda i, r: (i, 0))]
        out_specs = pl.BlockSpec((bt, D), lambda i, r: (i, 0))
        scratch = [pltpu.VMEM((bt, D), jnp.float32)]
        dims = ("parallel", "arbitrary")
    else:
        kernel = functools.partial(_item_rep_kernel_r_resident, inv_r=inv_r)
        grid = (B_pad // bt,)
        in_specs = [pl.BlockSpec((R, bt, D), lambda i: (0, i, 0)),
                    pl.BlockSpec((bt, D), lambda i: (i, 0))]
        out_specs = pl.BlockSpec((bt, D), lambda i: (i, 0))
        scratch = []
        dims = ("parallel",)

    out = pl.pallas_call(
        kernel,
        out_shape=jax.ShapeDtypeStruct((B_pad, D), out_dtype),
        grid_spec=pltpu.PrefetchScalarGridSpec(
            num_scalar_prefetch=0,
            grid=grid,
            in_specs=in_specs,
            out_specs=out_specs,
            scratch_shapes=scratch),
        compiler_params=pltpu.CompilerParams(
            dimension_semantics=dims,
            vmem_limit_bytes=vmem_limit),
    )(review_emb_rbd, title_emb)
    return out[:B]


# ---------------------------------------------------------------------------
# Deterministic stand-in for item_bert(...).last_hidden_state[:, 0, :]
# (plain-JAX glue — the real transformer encoder is external to ItemRep)
# ---------------------------------------------------------------------------
def bert_cls_stub(emb_table, input_ids, attention_mask):
    tok = emb_table[input_ids]                                        # (N, L, D)
    m = attention_mask.astype(jnp.float32)[..., None]                 # (N, L, 1)
    denom = jnp.maximum(jnp.sum(m, axis=1), 1.0)                      # (N, 1)
    return jnp.sum(tok * m, axis=1) / denom                           # (N, D) f32


# ---------------------------------------------------------------------------
# ItemRep.forward wrapper
# ---------------------------------------------------------------------------
def item_rep_forward(params, cfg, movie_id, title, title_mask,
                     review, review_mask, num_review_mask,
                     *, review_dtype=jnp.bfloat16, out_dtype=jnp.bfloat16,
                     force_r_grid=False):
    del movie_id, num_review_mask  # unused by the PyTorch forward as well
    B = title.shape[0]
    D = cfg["token_emb_dim"]
    R = cfg["n_review"]
    L = cfg["max_review_len"]
    # Title stays f32 into the kernel (cheap) — no pre-kernel precision loss.
    title_emb = bert_cls_stub(params["emb_table"], title, title_mask)     # (B, D)
    if R == 0:
        return title_emb
    # (B, R, L) -> (R, B, L): pooled CLS embeddings land directly in the
    # (R, B, D) layout the kernel wants (reduction axis leading).
    review_rbl = jnp.transpose(review, (1, 0, 2)).reshape(-1, L)
    review_mask_rbl = jnp.transpose(review_mask, (1, 0, 2)).reshape(-1, L)
    review_emb = bert_cls_stub(params["emb_table"], review_rbl,
                               review_mask_rbl).reshape(R, B, D)
    # Reviews enter narrow (bf16); kernel accumulates in f32, emits bf16.
    return item_rep_pallas(review_emb.astype(review_dtype), title_emb,
                           out_dtype=out_dtype, force_r_grid=force_r_grid)


if __name__ == "__main__":
    cfg = dict(n_review=4, max_review_len=8, max_title_len=8,
               token_emb_dim=128, vocab_size=100)
    B = 16  # -> bt=8, grid=(2,): sublane-aligned tiles

    key = jax.random.PRNGKey(0)
    k_emb, k_title, k_rev, k_mid = jax.random.split(key, 4)

    params = {
        "emb_table": (jax.random.normal(
            k_emb, (cfg["vocab_size"], cfg["token_emb_dim"]), jnp.float32) * 0.02),
    }

    movie_id = jax.random.randint(k_mid, (B,), 0, 6923, dtype=jnp.int32)
    title = jax.random.randint(k_title, (B, cfg["max_title_len"]),
                               0, cfg["vocab_size"], dtype=jnp.int32)
    title_mask = jnp.ones((B, cfg["max_title_len"]), jnp.int32)
    review = jax.random.randint(k_rev, (B, cfg["n_review"], cfg["max_review_len"]),
                                0, cfg["vocab_size"], dtype=jnp.int32)
    review_mask = jnp.ones((B, cfg["n_review"], cfg["max_review_len"]), jnp.int32)
    num_review_mask = jnp.ones((B, cfg["n_review"]), jnp.int32)

    # Path A (small R: resident (R, bt, D) block)
    out_a = jax.block_until_ready(
        item_rep_forward(params, cfg, movie_id, title, title_mask,
                         review, review_mask, num_review_mask))
    # Path B (R as trailing "arbitrary" grid axis with scratch accumulator)
    out_b = jax.block_until_ready(
        item_rep_forward(params, cfg, movie_id, title, title_mask,
                         review, review_mask, num_review_mask,
                         force_r_grid=True))

    # Pure-JAX reference: same bf16 review embeddings the kernel consumes,
    # f32 title, f32 accumulation, bf16 output.
    D = cfg["token_emb_dim"]
    L = cfg["max_review_len"]
    review_rbl = jnp.transpose(review, (1, 0, 2)).reshape(-1, L)
    review_mask_rbl = jnp.transpose(review_mask, (1, 0, 2)).reshape(-1, L)
    review_emb_ref = bert_cls_stub(params["emb_table"], review_rbl,
                                   review_mask_rbl).reshape(cfg["n_review"], B, D)
    title_emb_ref = bert_cls_stub(params["emb_table"], title, title_mask)
    review_bf = review_emb_ref.astype(jnp.bfloat16).astype(jnp.float32)
    ref = (jnp.mean(review_bf, axis=0) + title_emb_ref).astype(jnp.bfloat16)

    assert out_a.shape == (B, D) and out_b.shape == (B, D)
    assert out_a.dtype == jnp.bfloat16 and out_b.dtype == jnp.bfloat16
    assert jnp.allclose(out_a.astype(jnp.float32), ref.astype(jnp.float32),
                        atol=1e-3, rtol=1e-2), "path A mismatch vs reference"
    assert jnp.allclose(out_b.astype(jnp.float32), ref.astype(jnp.float32),
                        atol=1e-3, rtol=1e-2), "path B mismatch vs reference"
    print("KERNEL_OK")
</pallas_src>

<mosaic_0001>
module attributes {stable_mosaic.version = 11 : i64} {
  func.func @_item_rep_kernel_r_resident(%arg0: i32, %arg1: memref<4x8x128xbf16, #tpu.memory_space<vmem>>, %arg2: memref<8x128xf32, #tpu.memory_space<vmem>>, %arg3: memref<8x128xbf16, #tpu.memory_space<vmem>>) attributes {dimension_semantics = [#tpu.dimension_semantics<parallel>], iteration_bounds = array<i64: 2>, scalar_prefetch = 0 : i64, scratch_operands = 0 : i64, tpu.core_type = #tpu.core_type<tc>, window_params = [{transform_indices = @transform_0, window_bounds = array<i64: 4, 8, 128>}, {transform_indices = @transform_1, window_bounds = array<i64: 8, 128>}, {transform_indices = @transform_2, window_bounds = array<i64: 8, 128>}]} {
    %c0 = arith.constant 0 : index
    %c0_0 = arith.constant 0 : index
    %c0_1 = arith.constant 0 : index
    %0 = vector.load %arg1[%c0, %c0_0, %c0_1] : memref<4x8x128xbf16, #tpu.memory_space<vmem>>, vector<1x8x128xbf16>
    %1 = vector.shape_cast %0 : vector<1x8x128xbf16> to vector<8x128xbf16>
    %2 = arith.extf %1 : vector<8x128xbf16> to vector<8x128xf32>
    %c1 = arith.constant 1 : index
    %c0_2 = arith.constant 0 : index
    %c0_3 = arith.constant 0 : index
    %3 = vector.load %arg1[%c1, %c0_2, %c0_3] : memref<4x8x128xbf16, #tpu.memory_space<vmem>>, vector<1x8x128xbf16>
    %4 = vector.shape_cast %3 : vector<1x8x128xbf16> to vector<8x128xbf16>
    %5 = arith.extf %4 : vector<8x128xbf16> to vector<8x128xf32>
    %6 = arith.addf %2, %5 : vector<8x128xf32>
    %c2 = arith.constant 2 : index
    %c0_4 = arith.constant 0 : index
    %c0_5 = arith.constant 0 : index
    %7 = vector.load %arg1[%c2, %c0_4, %c0_5] : memref<4x8x128xbf16, #tpu.memory_space<vmem>>, vector<1x8x128xbf16>
    %8 = vector.shape_cast %7 : vector<1x8x128xbf16> to vector<8x128xbf16>
    %9 = arith.extf %8 : vector<8x128xbf16> to vector<8x128xf32>
    %10 = arith.addf %6, %9 : vector<8x128xf32>
    %c3 = arith.constant 3 : index
    %c0_6 = arith.constant 0 : index
    %c0_7 = arith.constant 0 : index
    %11 = vector.load %arg1[%c3, %c0_6, %c0_7] : memref<4x8x128xbf16, #tpu.memory_space<vmem>>, vector<1x8x128xbf16>
    %12 = vector.shape_cast %11 : vector<1x8x128xbf16> to vector<8x128xbf16>
    %13 = arith.extf %12 : vector<8x128xbf16> to vector<8x128xf32>
    %14 = arith.addf %10, %13 : vector<8x128xf32>
    %cst = arith.constant 2.500000e-01 : f32
    %15 = vector.broadcast %cst : f32 to vector<8x128xf32>
    %16 = arith.mulf %14, %15 : vector<8x128xf32>
    %c0_8 = arith.constant 0 : index
    %c0_9 = arith.constant 0 : index
    %17 = vector.load %arg2[%c0_8, %c0_9] : memref<8x128xf32, #tpu.memory_space<vmem>>, vector<8x128xf32>
    %18 = arith.addf %16, %17 : vector<8x128xf32>
    %19 = arith.truncf %18 : vector<8x128xf32> to vector<8x128xbf16>
    %c0_10 = arith.constant 0 : index
    %c0_11 = arith.constant 0 : index
    %20 = vector.load %arg3[%c0_10, %c0_11] : memref<8x128xbf16, #tpu.memory_space<vmem>>, vector<8x128xbf16>
    tpu.vector_store %arg3[%c0_10, %c0_11], %19 {strides = array<i32>} : memref<8x128xbf16, #tpu.memory_space<vmem>>, vector<8x128xbf16>,
    return
  }
  func.func @transform_0(%arg0: i32) -> (i32, i32, i32) {
    %c0_i32 = arith.constant 0 : i32
    %c0_i32_0 = arith.constant 0 : i32
    %c0_i32_1 = arith.constant 0 : i32
    return %c0_i32, %arg0, %c0_i32_0 : i32, i32, i32
  }
  func.func @transform_1(%arg0: i32) -> (i32, i32) {
    %c0_i32 = arith.constant 0 : i32
    %c0_i32_0 = arith.constant 0 : i32
    return %arg0, %c0_i32 : i32, i32
  }
  func.func @transform_2(%arg0: i32) -> (i32, i32) {
    %c0_i32 = arith.constant 0 : i32
    %c0_i32_0 = arith.constant 0 : i32
    return %arg0, %c0_i32 : i32, i32
  }
}

</mosaic_0001>

<llo_original>
// kernel: tpu_custom_call.1
$region0: #{tpu_custom_call.1}
  #allocation0 [shape = 'u32[]', space=smem, size = 0x4, offset = 0x4, fixed_abs, tag = 'smem constant byte address 0x4 - core index']
  #allocation1 [shape = 'u32[144,128]{1,0:T(1,128)}', space=vmem, size = 0x12000, scoped, tag = 'internal scratch']
  %s0 = inlined_call_operand.hbm [shape: bf16[4,16,128], index: 0, kind: input, shape index: {}]
  %s1 = inlined_call_operand.hbm [shape: f32[16,128], index: 1, kind: input, shape index: {}]
  %s2 = inlined_call_operand.hbm [shape: bf16[16,128], index: 2, kind: output, shape index: {}]
  %s3 = sld [smem:[#allocation0]]
  $region49: #{tpu_custom_call.1} parent=0
    _
  %s5 = ssub.s32 1, %s3
  %s6 = scalar_select 0, %s5, %s3
  $region1: #{tpu_custom_call.1} parent=0
    #allocation2 [shape = 'u8[16384]{0}', space=vmem, size = 0x4000, scoped, tag = 'input window, operand 0']
    #allocation3 [shape = 's32[2]{0}', space=sflag, size = 0x8, scoped, tag = 'scoped memory for tpu_custom_call.1']
    #allocation4 [shape = 's32[2]{0}', space=sflag, size = 0x8, scoped, tag = 'scoped memory for tpu_custom_call.1']
    #allocation5 [shape = 'u8[8192]{0}', space=vmem, size = 0x2000, scoped, tag = 'input window, operand 1']
    #allocation6 [shape = 's32[2]{0}', space=sflag, size = 0x8, scoped, tag = 'scoped memory for tpu_custom_call.1']
    #allocation7 [shape = 'u8[4096]{0}', space=vmem, size = 0x1000, scoped, tag = 'output window, operand 0']
    %7 = vsyncpa [#allocation3], 0
    %s8 = scalar_lea.sflag [#allocation3], 1
    %9 = vsyncpa %s8, 0
    %10 = vsyncpa [#allocation6], 0
    %s11 = scalar_lea.sflag [#allocation6], 1
    %12 = vsyncpa %s11, 0
    %13 = vsyncpa [#allocation4], 0
    %s14 = scalar_lea.sflag [#allocation4], 1
    %15 = vsyncpa %s14, 0
    loop: start=0, step=1, limit=4
    $region2: #{tpu_custom_call.1} parent=1 // loop_pre_header
      _
    $region3: #{tpu_custom_call.1} parent=1 // loop_header
      %s17 = sphi 0, %s21
      %p18 = scmp.ge.s32.totalorder %s17, 4
      %s27 = sphi 0, %s29
      %s30 = sphi 0, %s27
      %s31 = sphi 0, %s30
      %s47 = sphi 0, %s31
      %s53 = sphi 0, %s55
      %s56 = sphi 0, %s53
      %s57 = sphi 0, %s56
      %s73 = sphi 0, %s57
      %s79 = sphi 0, %s81
      %s82 = sphi 0, %s79
      %s83 = sphi 0, %s82
      %s99 = sphi 0, %s83
    $region4: #{tpu_custom_call.1} parent=1 // loop_header_branch
      %20 = sbr.rel (%p18) target = $region8
    $region5: #{tpu_custom_call.1} parent=1 // loop_body
      %s22 = ssub.s32 %s17, 1
      %s23 = ssub.s32 %s17, 2
      %s24 = sadd.s32 %s17, 1
      %s25 = ssub.s32 %s17, %s24
      %p26 = scmp.eq.s32.totalorder %s25, 0
      %s28 = sadd.s32 %s27, 1
      %s29 = scalar_select %p26, %s27, %s28
      %p32 = pneg %p26
      %p33 = scmp.eq.s32.totalorder %s17, 1
      %p34 = por %p32, %p33
      %p35 = scmp.ne.s32.totalorder %s27, %s30
      %p36 = scmp.eq.s32.totalorder %s17, 0
      %p37 = por %p35, %p36
      %p38 = scmp.ne.s32.totalorder %s27, %s30
      %p39 = scmp.eq.s32.totalorder %s22, 1
      %p40 = por %p38, %p39
      %p41 = scmp.ne.s32.totalorder %s30, %s31
      %p42 = scmp.eq.s32.totalorder %s22, 0
      %p43 = por %p41, %p42
      %p44 = scmp.ne.s32.totalorder %s30, %s31
      %p45 = scmp.eq.s32.totalorder %s23, 1
      %p46 = por %p44, %p45
      %p48 = scmp.ne.s32.totalorder %s31, %s47
      %p49 = scmp.eq.s32.totalorder %s23, 0
      %p50 = por %p48, %p49
      %s51 = ssub.s32 %s17, %s24
      %p52 = scmp.eq.s32.totalorder %s51, 0
      %s54 = sadd.s32 %s53, 1
      %s55 = scalar_select %p52, %s53, %s54
      %p58 = pneg %p52
      %p59 = scmp.eq.s32.totalorder %s17, 1
      %p60 = por %p58, %p59
      %p61 = scmp.ne.s32.totalorder %s53, %s56
      %p62 = scmp.eq.s32.totalorder %s17, 0
      %p63 = por %p61, %p62
      %p64 = scmp.ne.s32.totalorder %s53, %s56
      %p65 = scmp.eq.s32.totalorder %s22, 1
      %p66 = por %p64, %p65
      %p67 = scmp.ne.s32.totalorder %s56, %s57
      %p68 = scmp.eq.s32.totalorder %s22, 0
      %p69 = por %p67, %p68
      %p70 = scmp.ne.s32.totalorder %s56, %s57
      %p71 = scmp.eq.s32.totalorder %s23, 1
      %p72 = por %p70, %p71
      %p74 = scmp.ne.s32.totalorder %s57, %s73
      %p75 = scmp.eq.s32.totalorder %s23, 0
      %p76 = por %p74, %p75
      %s77 = ssub.s32 %s17, %s24
      %p78 = scmp.eq.s32.totalorder %s77, 0
      %s80 = sadd.s32 %s79, 1
      %s81 = scalar_select %p78, %s79, %s80
      %p84 = pneg %p78
      %p85 = scmp.eq.s32.totalorder %s17, 1
      %p86 = por %p84, %p85
      %p87 = scmp.ne.s32.totalorder %s79, %s82
      %p88 = scmp.eq.s32.totalorder %s17, 0
      %p89 = por %p87, %p88
      %p90 = scmp.ne.s32.totalorder %s79, %s82
      %p91 = scmp.eq.s32.totalorder %s22, 1
      %p92 = por %p90, %p91
      %p93 = scmp.ne.s32.totalorder %s82, %s83
      %p94 = scmp.eq.s32.totalorder %s22, 0
      %p95 = por %p93, %p94
      %p96 = scmp.ne.s32.totalorder %s82, %s83
      %p97 = scmp.eq.s32.totalorder %s23, 1
      %p98 = por %p96, %p97
      %p100 = scmp.ne.s32.totalorder %s83, %s99
      %p101 = scmp.eq.s32.totalorder %s23, 0
      %p102 = por %p100, %p101
      %p103 = scmp.le.s32.totalorder 1, %s17
      %p104 = scmp.lt.s32.totalorder %s17, 3
      %p105 = pnand %p103, %p104
      %p106 = pneg %p105
      // Predicated region
      $region9: #{tpu_custom_call.1} parent=5 // pred_check
        _
      $region10: #{tpu_custom_call.1} parent=5 // pred_check_branch
        %108 = sbr.rel (%p105) target = $region12
      $region11: #{tpu_custom_call.1} parent=5 // pred_region
        %s109 = ssub.s32 %s17, 1
      $region12: #{tpu_custom_call.1} parent=5 // pred_fallthru
        _
      %p110 = scmp.lt.s32.totalorder %s17, 2
      // Predicated region
      $region13: #{tpu_custom_call.1} parent=5 // pred_check
        %p111 = pneg %p110
      $region14: #{tpu_custom_call.1} parent=5 // pred_check_branch
        %113 = sbr.rel (%p111) target = $region16
      $region15: #{tpu_custom_call.1} parent=5 // pred_region
        // Predicated region
        $region17: #{tpu_custom_call.1} parent=15 // pred_check
          %p114 = pneg %p37
        $region18: #{tpu_custom_call.1} parent=15 // pred_check_branch
          %116 = sbr.rel (%p114) target = $region20
        $region19: #{tpu_custom_call.1} parent=15 // pred_region
          %s117 = sand.u32 %s27, 1
          %s118 = scalar_lea.sflag [#allocation3], %s117
          %s119 = sand.u32 %s27, 1
          %s120 = smul.addr %s119, 16
          %s121 = scalar_lea.vmem [#allocation2], %s120
          %s123 = ssub.s32 256, 256
          %124 = vsyncadd %s118, %s123
          %s125 = smul.addr %s17, 64
          %s126 = scalar_lea.hbm %s0, %s125
          %s127 = sshll.u32 %s121, 4
          %s128 = int_to_ptr.vmem [resolvable:$true] %s127
          %133 = dma.hbm_to_vmem [thread:$0]  %s126, 256, %s128, %s118, 128, 64, 4
        $region20: #{tpu_custom_call.1} parent=15 // pred_fallthru
          _
        // Predicated region
        $region21: #{tpu_custom_call.1} parent=15 // pred_check
          %p134 = pneg %p63
        $region22: #{tpu_custom_call.1} parent=15 // pred_check_branch
          %136 = sbr.rel (%p134) target = $region24
        $region23: #{tpu_custom_call.1} parent=15 // pred_region
          %s137 = sand.u32 %s53, 1
          %s138 = scalar_lea.sflag [#allocation6], %s137
          %s139 = sand.u32 %s53, 1
          %s140 = smul.addr %s139, 8
          %s141 = scalar_lea.vmem [#allocation5], %s140
          %s143 = ssub.s32 128, 128
          %144 = vsyncadd %s138, %s143
          %s145 = smul.addr %s17, 128
          %s146 = scalar_lea.hbm %s1, %s145
          %s148 = sshll.u32 %s141, 4
          %s149 = int_to_ptr.vmem [resolvable:$true] %s148
          %151 = dma.hbm_to_vmem [thread:$0]  %s146, 128, %s149, %s138
        $region24: #{tpu_custom_call.1} parent=15 // pred_fallthru
          _
      $region16: #{tpu_custom_call.1} parent=5 // pred_fallthru
        _
      %p152 = scmp.le.s32.totalorder 1, %s17
      %p153 = scmp.lt.s32.totalorder %s17, 3
      %p154 = pnand %p152, %p153
      %p155 = pneg %p154
      // Predicated region
      $region25: #{tpu_custom_call.1} parent=5 // pred_check
        _
      $region26: #{tpu_custom_call.1} parent=5 // pred_check_branch
        %157 = sbr.rel (%p154) target = $region28
      $region27: #{tpu_custom_call.1} parent=5 // pred_region
        %s158 = ssub.s32 %s17, 1
        %s159 = sand.u32 %s30, 1
        %s160 = scalar_lea.sflag [#allocation3], %s159
        %s161 = sand.u32 %s30, 1
        %s162 = smul.addr %s161, 16
        %s163 = scalar_lea.vmem [#allocation2], %s162
        // Predicated region
        $region29: #{tpu_custom_call.1} parent=27 // pred_check
          %p164 = pneg %p43
        $region30: #{tpu_custom_call.1} parent=27 // pred_check_branch
          %166 = sbr.rel (%p164) target = $region32
        $region31: #{tpu_custom_call.1} parent=27 // pred_region
          %167 = dma.done %s160, 256
        $region32: #{tpu_custom_call.1} parent=27 // pred_fallthru
          _
        %s168 = sand.u32 %s56, 1
        %s169 = scalar_lea.sflag [#allocation6], %s168
        %s170 = sand.u32 %s56, 1
        %s171 = smul.addr %s170, 8
        %s172 = scalar_lea.vmem [#allocation5], %s171
        // Predicated region
        $region33: #{tpu_custom_call.1} parent=27 // pred_check
          %p173 = pneg %p69
        $region34: #{tpu_custom_call.1} parent=27 // pred_check_branch
          %175 = sbr.rel (%p173) target = $region36
        $region35: #{tpu_custom_call.1} parent=27 // pred_region
          %176 = dma.done %s169, 128
        $region36: #{tpu_custom_call.1} parent=27 // pred_fallthru
          _
        %s177 = sand.u32 %s30, 1
        %s178 = scalar_lea.sflag [#allocation3], %s177
        %s179 = sand.u32 %s30, 1
        %s180 = smul.addr %s179, 16
        %s181 = scalar_lea.vmem [#allocation2], %s180
        %p182 = pneg %p43
        %p183 = pneg %p40
        %s184 = sand.u32 %s56, 1
        %s185 = scalar_lea.sflag [#allocation6], %s184
        %s186 = sand.u32 %s56, 1
        %s187 = smul.addr %s186, 8
        %s188 = scalar_lea.vmem [#allocation5], %s187
        %p189 = pneg %p69
        %p190 = pneg %p66
        %p191 = pneg %p95
        %p192 = pneg %p92
        %s193 = sand.u32 %s82, 1
        %s194 = scalar_lea.sflag [#allocation4], %s193
        %s195 = sand.u32 %s82, 1
        %s196 = smul.addr %s195, 4
        %s197 = scalar_lea.vmem [#allocation7], %s196
        %v198 = vld [vmem:[%s163] sm:$0xf]
        %v199 = vunpack.c.l.bf16 %v198
        %s200 = scalar_lea.vmem %s163, 4 [#allocation2]
        %v201 = vld [vmem:[%s200] sm:$0xf]
        %v202 = vunpack.c.l.bf16 %v201
        %v203 = vadd.f32 %v199, %v202
        %s204 = scalar_lea.vmem %s163, 8 [#allocation2]
        %v205 = vld [vmem:[%s204] sm:$0xf]
        %v206 = vunpack.c.l.bf16 %v205
        %v207 = vadd.f32 %v203, %v206
        %s208 = scalar_lea.vmem %s163, 12 [#allocation2]
        %v209 = vld [vmem:[%s208] sm:$0xf]
        %v210 = vunpack.c.l.bf16 %v209
        %v211 = vadd.f32 %v207, %v210
        %v212 = vmul.f32 %v211, 0.25
        %v213 = vld [vmem:[%s172] sm:$0xff]
        %v214 = vadd.f32 %v212, %v213
        %v215 = vpack.c.bf16 %v214, %v214
        %216 = vst [vmem:[%s197] sm:$0xf] %v215
        %s217 = sand.u32 %s82, 1
        %s218 = scalar_lea.sflag [#allocation4], %s217
        %s219 = sand.u32 %s82, 1
        %s220 = smul.addr %s219, 4
        %s221 = scalar_lea.vmem [#allocation7], %s220
        // Predicated region
        $region37: #{tpu_custom_call.1} parent=27 // pred_check
          %p222 = pneg %p92
        $region38: #{tpu_custom_call.1} parent=27 // pred_check_branch
          %224 = sbr.rel (%p222) target = $region40
        $region39: #{tpu_custom_call.1} parent=27 // pred_region
          %s226 = ssub.s32 64, 64
          %227 = vsyncadd %s218, %s226
          %s228 = smul.addr %s22, 64
          %s229 = scalar_lea.hbm %s2, %s228
          %s231 = sshll.u32 %s221, 4
          %s232 = int_to_ptr.vmem [resolvable:$true] %s231
          %234 = dma.vmem_to_hbm [thread:$0]  %s232, 64, %s229, %s218
        $region40: #{tpu_custom_call.1} parent=27 // pred_fallthru
          _
      $region28: #{tpu_custom_call.1} parent=5 // pred_fallthru
        _
      %p235 = scmp.le.s32.totalorder 2, %s17
      // Predicated region
      $region41: #{tpu_custom_call.1} parent=5 // pred_check
        %p236 = pneg %p235
      $region42: #{tpu_custom_call.1} parent=5 // pred_check_branch
        %238 = sbr.rel (%p236) target = $region44
      $region43: #{tpu_custom_call.1} parent=5 // pred_region
        %s239 = ssub.s32 %s17, 2
        // Predicated region
        $region45: #{tpu_custom_call.1} parent=43 // pred_check
          %p240 = pneg %p98
        $region46: #{tpu_custom_call.1} parent=43 // pred_check_branch
          %242 = sbr.rel (%p240) target = $region48
        $region47: #{tpu_custom_call.1} parent=43 // pred_region
          %s243 = sand.u32 %s83, 1
          %s244 = scalar_lea.sflag [#allocation4], %s243
          %s245 = sand.u32 %s83, 1
          %s246 = smul.addr %s245, 4
          %s247 = scalar_lea.vmem [#allocation7], %s246
          %248 = dma.done %s244, 64
        $region48: #{tpu_custom_call.1} parent=43 // pred_fallthru
          _
      $region44: #{tpu_custom_call.1} parent=5 // pred_fallthru
        _
    $region6: #{tpu_custom_call.1} parent=1 // loop_footer
      %s21 = sadd.s32 1, %s17
    $region7: #{tpu_custom_call.1} parent=1 // loop_footer_branch
      %16 = sbr.rel target = $region3
    $region8: #{tpu_custom_call.1} parent=1 // loop_exit
      _
    %249 = vsyncpa [#allocation3], 1
    %s250 = scalar_lea.sflag [#allocation3], 1
    %251 = vsyncpa %s250, 1
    %252 = vsyncpa [#allocation6], 1
    %s253 = scalar_lea.sflag [#allocation6], 1
    %254 = vsyncpa %s253, 1
    %255 = vsyncpa [#allocation4], 1
    %s256 = scalar_lea.sflag [#allocation4], 1
    %257 = vsyncpa %s256, 1

</llo_original>
